<compile_context>
chip_gen: v7x
topology: tpu7x:2x2x1
jax: 0.10.0
libtpu: 0.0.40
codegen_flags: <defaults>
</compile_context>

<pallas_src>
import functools

import jax
import jax.numpy as jnp
from jax.experimental import pallas as pl
from jax.experimental.pallas import tpu as pltpu

_LANE = 128


def _round_up(n, m):
    return ((n + m - 1) // m) * m


def _itemsize(dt):
    return jnp.dtype(dt).itemsize


def _tpu_vmem_budget_and_cap():
    """Returns (tile-sizing budget, vmem_limit cap) in bytes, per generation."""
    kind = ""
    try:
        kind = jax.devices()[0].device_kind.lower().replace(" ", "")
    except Exception:
        pass
    if "v7" in kind or "tpu7" in kind:
        # v7x: 64 MiB physical VMEM per TensorCore -> leave headroom.
        return 48 << 20, 56 << 20
    # v5e / v6e: 128 MiB physical VMEM (scoped default is much lower, so we
    # raise vmem_limit_bytes explicitly below).
    return 96 << 20, 100 << 20


def _resident_spec(shape):
    """BlockSpec for an operand that never changes across grid steps."""
    index_map = lambda i: (0, 0)
    try:
        # Single-buffered: no point double-buffering a never-refetched block.
        return pl.BlockSpec(shape, index_map, pipeline_mode=pl.Buffered(1))
    except TypeError:
        # Older jax without pipeline_mode on BlockSpec: fall back.
        return pl.BlockSpec(shape, index_map)


def _fused_adapter_kernel(num_layers, compute_dtype, x_ref, *refs):
    """Fused Adapter MLP: h = relu(h @ w_l + b_l) for l in range(num_layers).

    x_ref : [TB, D0_pad]   input dtype (usually f32); cast in-kernel.
    refs  : w0, b0, w1, b1, ..., o_ref
            w_l : [Dl_pad, D(l+1)_pad]  compute dtype (resident)
            b_l : [1, D(l+1)_pad]       float32      (resident)
    o_ref : [TB, Dlast_pad] out dtype, lane-dense (unmasked stores).
    """
    o_ref = refs[-1]
    h = x_ref[...].astype(compute_dtype)
    for l in range(num_layers):
        w_ref = refs[2 * l]
        b_ref = refs[2 * l + 1]
        # MXU matmul with f32 accumulation; bias + ReLU on the VPU in f32.
        y = jnp.dot(h, w_ref[...], preferred_element_type=jnp.float32)
        h = jnp.maximum(y + b_ref[...], 0.0)
        if l + 1 < num_layers:
            h = h.astype(compute_dtype)
    o_ref[...] = h.astype(o_ref.dtype)


def prepare_adapter_params(params, compute_dtype=jnp.bfloat16):
    """Pad every weight/bias to lane-dense (multiple-of-128 feature dims) and
    cast weights to the MXU compute dtype. Call ONCE at init / after each
    optimizer step — NOT per forward."""
    padded = []
    for w, b in params:
        din, dout = w.shape
        din_p = _round_up(din, _LANE)
        dout_p = _round_up(dout, _LANE)
        w_p = jnp.pad(w.astype(compute_dtype),
                      ((0, din_p - din), (0, dout_p - dout)))
        b_p = jnp.pad(b.astype(jnp.float32).reshape(1, dout),
                      ((0, 0), (0, dout_p - dout)))
        padded.append((w_p, b_p))
    return padded


@functools.partial(
    jax.jit,
    static_argnames=("out_features", "compute_dtype", "out_dtype", "tile_b"))
def item_module_forward(text_embs, padded_params, *, out_features,
                        compute_dtype=jnp.bfloat16, out_dtype=jnp.float32,
                        tile_b=None):
    """ItemModule.forward starting from the frozen BERT pooler_output.

    text_embs     : [batch, hidden] float32 (pooler_output)
    padded_params : output of prepare_adapter_params()
    out_features  : configs['layers'][-1] (unpadded output width)
    Returns       : [batch, out_features] out_dtype
    """
    batch, d0 = text_embs.shape
    num_layers = len(padded_params)
    d0_p = padded_params[0][0].shape[0]
    d_last_p = padded_params[-1][0].shape[1]

    # ---- footprint model (bytes) for tile sizing / vmem limit ----------------
    weight_bytes = 0
    d_max_p = d0_p
    for w_p, b_p_ in padded_params:
        weight_bytes += w_p.size * _itemsize(w_p.dtype)
        weight_bytes += b_p_.size * _itemsize(b_p_.dtype)
        d_max_p = max(d_max_p, w_p.shape[1])
    per_row_bytes = (2 * d0_p * _itemsize(text_embs.dtype)      # input, 2 bufs
                     + 2 * d_last_p * _itemsize(out_dtype)      # output, 2 bufs
                     + 2 * d_max_p * 4)                         # f32 intermediates
    budget, vmem_cap = _tpu_vmem_budget_and_cap()

    # ---- batch tiling --------------------------------------------------------
    # bf16 packs 16 rows per vreg; keep blocks 16-row aligned on the fast path.
    align = 16 if jnp.dtype(compute_dtype) == jnp.dtype(jnp.bfloat16) else 8
    if tile_b is None:
        if batch <= 2 * align:
            tile_b = _round_up(batch, align)          # too small to split
        else:
            # >= 2 grid steps (both v7x TensorCores busy), <= 512 rows/tile.
            tile_b = min(512, _round_up(pl.cdiv(batch, 2), align))
        avail = max(0, budget - weight_bytes)
        max_tile = max(align, (avail // max(per_row_bytes, 1)) // align * align)
        tile_b = max(align, min(tile_b, max_tile))
    b_p = _round_up(batch, tile_b)

    footprint = weight_bytes + tile_b * per_row_bytes
    vmem_limit = int(min(vmem_cap, max(2 * footprint, 32 << 20)))

    # ---- input: pass through untouched when already aligned ------------------
    if d0 == d0_p and batch == b_p:
        x_in = text_embs                                # no wrapper copy
    else:
        x_in = jnp.pad(text_embs, ((0, b_p - batch), (0, d0_p - d0)))

    operands = [x_in]
    in_specs = [pl.BlockSpec((tile_b, d0_p), lambda i: (i, 0))]
    for w_p, b_pad in padded_params:
        operands += [w_p, b_pad]
        in_specs += [_resident_spec(w_p.shape), _resident_spec(b_pad.shape)]

    out_p = pl.pallas_call(
        functools.partial(_fused_adapter_kernel, num_layers, compute_dtype),
        out_shape=jax.ShapeDtypeStruct((b_p, d_last_p), out_dtype),
        grid=(b_p // tile_b,),
        in_specs=in_specs,
        out_specs=pl.BlockSpec((tile_b, d_last_p), lambda i: (i, 0)),
        compiler_params=pltpu.CompilerParams(
            dimension_semantics=("parallel",),
            vmem_limit_bytes=vmem_limit),
    )(*operands)

    return out_p[:batch, :out_features]


def init_adapter_params(key, layer_sizes):
    """torch.nn.Linear-style init (uniform +/- 1/sqrt(fan_in))."""
    params = []
    for in_size, out_size in zip(layer_sizes[:-1], layer_sizes[1:]):
        key, kw, kb = jax.random.split(key, 3)
        bound = 1.0 / jnp.sqrt(jnp.float32(in_size))
        # torch stores weight as (out, in); transpose to (in, out) for x @ w.
        w_torch = jax.random.uniform(
            kw, (out_size, in_size), jnp.float32, minval=-bound, maxval=bound)
        b = jax.random.uniform(
            kb, (out_size,), jnp.float32, minval=-bound, maxval=bound)
        params.append((w_torch.T, b))
    return params


def reference_forward(text_embs, params, compute_dtype=jnp.float32):
    """Pure-JAX reference with the same casting pattern as the kernel."""
    h = text_embs
    for w, b in params:
        y = jnp.dot(h.astype(compute_dtype), w.astype(compute_dtype),
                    preferred_element_type=jnp.float32)
        h = jnp.maximum(y + b.reshape(1, -1).astype(jnp.float32), 0.0)
    return h


if __name__ == "__main__":
    # Small synthetic config consistent with the module:
    #   configs['layers'] = [32, 64, 16]  (adapter MLP sizes)
    #   batch of 8 items, stand-in pooler_output hidden size = 32.
    layers = [32, 64, 16]
    batch = 8

    key = jax.random.PRNGKey(0)
    key, k_emb = jax.random.split(key)
    text_embs = jax.random.normal(k_emb, (batch, layers[0]), jnp.float32)
    params = init_adapter_params(key, layers)

    # f32 compute path: tight check against the pure-JAX reference.
    pp_f32 = prepare_adapter_params(params, jnp.float32)
    out_f32 = item_module_forward(text_embs, pp_f32, out_features=layers[-1],
                                  compute_dtype=jnp.float32)
    out_f32 = jax.block_until_ready(out_f32)
    ref_f32 = reference_forward(text_embs, params, jnp.float32)
    assert out_f32.shape == (batch, layers[-1])
    assert jnp.allclose(out_f32, ref_f32, atol=1e-5, rtol=1e-5)

    # Default bf16 MXU fast path: compare against a reference using the same
    # bf16 operand casting (f32 accumulation in both).
    pp_bf16 = prepare_adapter_params(params, jnp.bfloat16)
    out_bf16 = item_module_forward(text_embs, pp_bf16, out_features=layers[-1])
    out_bf16 = jax.block_until_ready(out_bf16)
    ref_bf16 = reference_forward(text_embs, params, jnp.bfloat16)
    assert out_bf16.shape == (batch, layers[-1])
    assert jnp.allclose(out_bf16, ref_bf16, atol=2e-2, rtol=2e-2)

    print("KERNEL_OK")
</pallas_src>

<mosaic_0001>
module attributes {stable_mosaic.version = 11 : i64} {
  func.func @_fused_adapter_kernel(%arg0: i32, %arg1: memref<8x128xf32, #tpu.memory_space<vmem>>, %arg2: memref<128x128xf32, #tpu.memory_space<vmem>>, %arg3: memref<1x128xf32, #tpu.memory_space<vmem>>, %arg4: memref<128x128xf32, #tpu.memory_space<vmem>>, %arg5: memref<1x128xf32, #tpu.memory_space<vmem>>, %arg6: memref<8x128xf32, #tpu.memory_space<vmem>>) attributes {dimension_semantics = [#tpu.dimension_semantics<parallel>], iteration_bounds = array<i64: 1>, scalar_prefetch = 0 : i64, scratch_operands = 0 : i64, tpu.core_type = #tpu.core_type<tc>, window_params = [{transform_indices = @transform_0, window_bounds = array<i64: 8, 128>}, {pipeline_mode = #tpu.pipeline_mode<synchronous>, transform_indices = @transform_1, window_bounds = array<i64: 128, 128>}, {pipeline_mode = #tpu.pipeline_mode<synchronous>, transform_indices = @transform_2, window_bounds = array<i64: 1, 128>}, {pipeline_mode = #tpu.pipeline_mode<synchronous>, transform_indices = @transform_3, window_bounds = array<i64: 128, 128>}, {pipeline_mode = #tpu.pipeline_mode<synchronous>, transform_indices = @transform_4, window_bounds = array<i64: 1, 128>}, {transform_indices = @transform_5, window_bounds = array<i64: 8, 128>}]} {
    %c0 = arith.constant 0 : index
    %c0_0 = arith.constant 0 : index
    %0 = vector.load %arg1[%c0, %c0_0] : memref<8x128xf32, #tpu.memory_space<vmem>>, vector<8x128xf32>
    %c0_1 = arith.constant 0 : index
    %c0_2 = arith.constant 0 : index
    %1 = vector.load %arg2[%c0_1, %c0_2] : memref<128x128xf32, #tpu.memory_space<vmem>>, vector<128x128xf32>
    %cst = arith.constant dense<0.000000e+00> : vector<8x128xf32>
    %2 = tpu.matmul %0, %1, %cst {dimension_numbers = #tpu.dot_dimension_numbers<[1], [0], [0], [1], [0, 0, 1, 1], [], []>} : vector<8x128xf32>, vector<128x128xf32>, vector<8x128xf32> -> vector<8x128xf32>
    %c0_3 = arith.constant 0 : index
    %c0_4 = arith.constant 0 : index
    %3 = vector.load %arg3[%c0_3, %c0_4] : memref<1x128xf32, #tpu.memory_space<vmem>>, vector<1x128xf32>
    %4 = vector.broadcast %3 : vector<1x128xf32> to vector<8x128xf32>
    %5 = arith.addf %2, %4 : vector<8x128xf32>
    %cst_5 = arith.constant 0.000000e+00 : f32
    %6 = vector.broadcast %cst_5 : f32 to vector<8x128xf32>
    %7 = arith.maximumf %5, %6 : vector<8x128xf32>
    %c0_6 = arith.constant 0 : index
    %c0_7 = arith.constant 0 : index
    %8 = vector.load %arg4[%c0_6, %c0_7] : memref<128x128xf32, #tpu.memory_space<vmem>>, vector<128x128xf32>
    %cst_8 = arith.constant dense<0.000000e+00> : vector<8x128xf32>
    %9 = tpu.matmul %7, %8, %cst_8 {dimension_numbers = #tpu.dot_dimension_numbers<[1], [0], [0], [1], [0, 0, 1, 1], [], []>} : vector<8x128xf32>, vector<128x128xf32>, vector<8x128xf32> -> vector<8x128xf32>
    %c0_9 = arith.constant 0 : index
    %c0_10 = arith.constant 0 : index
    %10 = vector.load %arg5[%c0_9, %c0_10] : memref<1x128xf32, #tpu.memory_space<vmem>>, vector<1x128xf32>
    %11 = vector.broadcast %10 : vector<1x128xf32> to vector<8x128xf32>
    %12 = arith.addf %9, %11 : vector<8x128xf32>
    %cst_11 = arith.constant 0.000000e+00 : f32
    %13 = vector.broadcast %cst_11 : f32 to vector<8x128xf32>
    %14 = arith.maximumf %12, %13 : vector<8x128xf32>
    %c0_12 = arith.constant 0 : index
    %c0_13 = arith.constant 0 : index
    %15 = vector.load %arg6[%c0_12, %c0_13] : memref<8x128xf32, #tpu.memory_space<vmem>>, vector<8x128xf32>
    tpu.vector_store %arg6[%c0_12, %c0_13], %14 {strides = array<i32>} : memref<8x128xf32, #tpu.memory_space<vmem>>, vector<8x128xf32>,
    return
  }
  func.func @transform_0(%arg0: i32) -> (i32, i32) {
    %c0_i32 = arith.constant 0 : i32
    %c0_i32_0 = arith.constant 0 : i32
    return %arg0, %c0_i32 : i32, i32
  }
  func.func @transform_1(%arg0: i32) -> (i32, i32) {
    %c0_i32 = arith.constant 0 : i32
    %c0_i32_0 = arith.constant 0 : i32
    %c0_i32_1 = arith.constant 0 : i32
    return %c0_i32, %c0_i32_0 : i32, i32
  }
  func.func @transform_2(%arg0: i32) -> (i32, i32) {
    %c0_i32 = arith.constant 0 : i32
    %c0_i32_0 = arith.constant 0 : i32
    %c0_i32_1 = arith.constant 0 : i32
    return %c0_i32, %c0_i32_0 : i32, i32
  }
  func.func @transform_3(%arg0: i32) -> (i32, i32) {
    %c0_i32 = arith.constant 0 : i32
    %c0_i32_0 = arith.constant 0 : i32
    %c0_i32_1 = arith.constant 0 : i32
    return %c0_i32, %c0_i32_0 : i32, i32
  }
  func.func @transform_4(%arg0: i32) -> (i32, i32) {
    %c0_i32 = arith.constant 0 : i32
    %c0_i32_0 = arith.constant 0 : i32
    %c0_i32_1 = arith.constant 0 : i32
    return %c0_i32, %c0_i32_0 : i32, i32
  }
  func.func @transform_5(%arg0: i32) -> (i32, i32) {
    %c0_i32 = arith.constant 0 : i32
    %c0_i32_0 = arith.constant 0 : i32
    return %arg0, %c0_i32 : i32, i32
  }
}

</mosaic_0001>

<llo_original>
// kernel: item_module_forward.1
$region0: #{item_module_forward.1}
  #allocation0 [shape = 'u32[]', space=smem, size = 0x4, offset = 0x4, fixed_abs, tag = 'smem constant byte address 0x4 - core index']
  #allocation1 [shape = 'u32[144,128]{1,0:T(1,128)}', space=vmem, size = 0x12000, scoped, tag = 'internal scratch']
  %s0 = inlined_call_operand.vmem [shape: f32[8,128], index: 0, kind: input, shape index: {}]
  %s1 = inlined_call_operand.hbm [shape: f32[128,128], index: 1, kind: input, shape index: {}]
  %s2 = inlined_call_operand.vmem [shape: f32[1,128], index: 2, kind: input, shape index: {}]
  %s3 = inlined_call_operand.hbm [shape: f32[128,128], index: 3, kind: input, shape index: {}]
  %s4 = inlined_call_operand.vmem [shape: f32[1,128], index: 4, kind: input, shape index: {}]
  %s5 = inlined_call_operand.hbm [shape: f32[8,128], index: 5, kind: output, shape index: {}]
  %s6 = sld [smem:[#allocation0]]
  $region38: #{item_module_forward.1} parent=0
    _
  %s8 = ssub.s32 1, %s6
  %s9 = scalar_select 0, %s8, %s6
  $region1: #{item_module_forward.1} parent=0
    #allocation2 [shape = 'u8[65536]{0}', space=vmem, size = 0x10000, scoped, tag = 'input window, operand 1, single buffered']
    #allocation3 [shape = 's32[1]{0}', space=sflag, size = 0x4, scoped, tag = 'scoped memory for item_module_forward.1']
    #allocation4 [shape = 's32[1]{0}', space=sflag, size = 0x4, scoped, tag = 'scoped memory for item_module_forward.1']
    #allocation5 [shape = 'u8[65536]{0}', space=vmem, size = 0x10000, scoped, tag = 'input window, operand 3, single buffered']
    #allocation6 [shape = 's32[1]{0}', space=sflag, size = 0x4, scoped, tag = 'scoped memory for item_module_forward.1']
    #allocation7 [shape = 'u8[4096]{0}', space=vmem, size = 0x1000, scoped, tag = 'output window, operand 0, single buffered']
    %10 = vsyncpa [#allocation3], 0
    %11 = vsyncpa [#allocation6], 0
    %12 = vsyncpa [#allocation4], 0
    // Predicated region
    $region2: #{item_module_forward.1} parent=1 // pred_check
      _
    $region3: #{item_module_forward.1} parent=1 // pred_check_branch
      %14 = sbr.rel (0) target = $region5
    $region4: #{item_module_forward.1} parent=1 // pred_region
      _
    $region5: #{item_module_forward.1} parent=1 // pred_fallthru
      _
    // Predicated region
    $region6: #{item_module_forward.1} parent=1 // pred_check
      _
    $region7: #{item_module_forward.1} parent=1 // pred_check_branch
      %16 = sbr.rel (0) target = $region9
    $region8: #{item_module_forward.1} parent=1 // pred_region
      %s18 = ssub.s32 2048, 2048
      %19 = vsyncadd [#allocation3], %s18
      %s20 = sshll.u32 [#allocation2], 4
      %s21 = int_to_ptr.vmem [resolvable:$true] %s20
      %26 = dma.hbm_to_vmem [thread:$0]  %s1, 2048, %s21, [#allocation3], 128, 128, 8
    $region9: #{item_module_forward.1} parent=1 // pred_fallthru
      _
    // Predicated region
    $region10: #{item_module_forward.1} parent=1 // pred_check
      _
    $region11: #{item_module_forward.1} parent=1 // pred_check_branch
      %28 = sbr.rel (0) target = $region13
    $region12: #{item_module_forward.1} parent=1 // pred_region
      _
    $region13: #{item_module_forward.1} parent=1 // pred_fallthru
      _
    // Predicated region
    $region14: #{item_module_forward.1} parent=1 // pred_check
      _
    $region15: #{item_module_forward.1} parent=1 // pred_check_branch
      %30 = sbr.rel (0) target = $region17
    $region16: #{item_module_forward.1} parent=1 // pred_region
      %s32 = ssub.s32 2048, 2048
      %33 = vsyncadd [#allocation6], %s32
      %s34 = sshll.u32 [#allocation5], 4
      %s35 = int_to_ptr.vmem [resolvable:$true] %s34
      %40 = dma.hbm_to_vmem [thread:$0]  %s3, 2048, %s35, [#allocation6], 128, 128, 8
    $region17: #{item_module_forward.1} parent=1 // pred_fallthru
      _
    // Predicated region
    $region18: #{item_module_forward.1} parent=1 // pred_check
      _
    $region19: #{item_module_forward.1} parent=1 // pred_check_branch
      %42 = sbr.rel (0) target = $region21
    $region20: #{item_module_forward.1} parent=1 // pred_region
      _
    $region21: #{item_module_forward.1} parent=1 // pred_fallthru
      _
    // Predicated region
    $region22: #{item_module_forward.1} parent=1 // pred_check
      _
    $region23: #{item_module_forward.1} parent=1 // pred_check_branch
      %44 = sbr.rel (0) target = $region25
    $region24: #{item_module_forward.1} parent=1 // pred_region
      %45 = dma.done [#allocation3], 2048
    $region25: #{item_module_forward.1} parent=1 // pred_fallthru
      _
    // Predicated region
    $region26: #{item_module_forward.1} parent=1 // pred_check
      _
    $region27: #{item_module_forward.1} parent=1 // pred_check_branch
      %47 = sbr.rel (0) target = $region29
    $region28: #{item_module_forward.1} parent=1 // pred_region
      %48 = dma.done [#allocation6], 2048
    $region29: #{item_module_forward.1} parent=1 // pred_fallthru
      _
    %v49 = vld [vmem:[%s0] sm:$0xff]
    %v50 = vld [vmem:[#allocation2] sm:$0xff]
    %v51 = vld [vmem:[#allocation2 + $0x8] sm:$0xff]
    %v52 = vld [vmem:[#allocation2 + $0x10] sm:$0xff]
    %v53 = vld [vmem:[#allocation2 + $0x18] sm:$0xff]
    %v54 = vld [vmem:[#allocation2 + $0x20] sm:$0xff]
    %v55 = vld [vmem:[#allocation2 + $0x28] sm:$0xff]
    %v56 = vld [vmem:[#allocation2 + $0x30] sm:$0xff]
    %v57 = vld [vmem:[#allocation2 + $0x38] sm:$0xff]
    %v58 = vld [vmem:[#allocation2 + $0x40] sm:$0xff]
    %v59 = vld [vmem:[#allocation2 + $0x48] sm:$0xff]
    %v60 = vld [vmem:[#allocation2 + $0x50] sm:$0xff]
    %v61 = vld [vmem:[#allocation2 + $0x58] sm:$0xff]
    %v62 = vld [vmem:[#allocation2 + $0x60] sm:$0xff]
    %v63 = vld [vmem:[#allocation2 + $0x68] sm:$0xff]
    %v64 = vld [vmem:[#allocation2 + $0x70] sm:$0xff]
    %v65 = vld [vmem:[#allocation2 + $0x78] sm:$0xff]
    %v66 = vld [vmem:[%s2] sm:$0x1]
    %v68 = vlaneseq
    %v69 = vshrl.u32 %v68, 7
    %v70 = vsub.s32 0, %v69
    %v71 = vrot.slane %v66, %v70
    %73 = vmatprep.subr.mxu0 0.0
    %74 = vmatpush1.msra.mxu0 %v50
    %75 = vmatprep.subr.mxu0 0.0
    %76 = vmatpush1.msra.mxu0 %v51
    %77 = vmatprep.subr.mxu0 0.0
    %78 = vmatpush1.msra.mxu0 %v52
    %79 = vmatprep.subr.mxu0 0.0
    %80 = vmatpush1.msra.mxu0 %v53
    %81 = vmatprep.subr.mxu0 0.0
    %82 = vmatpush1.msra.mxu0 %v54
    %83 = vmatprep.subr.mxu0 0.0
    %84 = vmatpush1.msra.mxu0 %v55
    %85 = vmatprep.subr.mxu0 0.0
    %86 = vmatpush1.msra.mxu0 %v56
    %87 = vmatprep.subr.mxu0 0.0
    %88 = vmatpush1.msra.mxu0 %v57
    %89 = vmatprep.subr.mxu0 0.0
    %90 = vmatpush1.msra.mxu0 %v58
    %91 = vmatprep.subr.mxu0 0.0
    %92 = vmatpush1.msra.mxu0 %v59
    %93 = vmatprep.subr.mxu0 0.0
    %94 = vmatpush1.msra.mxu0 %v60
    %95 = vmatprep.subr.mxu0 0.0
    %96 = vmatpush1.msra.mxu0 %v61
    %97 = vmatprep.subr.mxu0 0.0
    %98 = vmatpush1.msra.mxu0 %v62
    %99 = vmatprep.subr.mxu0 0.0
    %100 = vmatpush1.msra.mxu0 %v63
    %101 = vmatprep.subr.mxu0 0.0
    %102 = vmatpush1.msra.mxu0 %v64
    %103 = vmatprep.subr.mxu0 0.0
    %104 = vmatpush1.msra.mxu0 %v65
    %105 = vmatprep.subr.mxu0 0.0
    %106 = vmatpush1.msra.mxu0 0.0
    %107 = vmatprep.subr.mxu0 0.0
    %108 = vmatpush1.msra.mxu0 0.0
    %109 = vmatprep.subr.mxu0 0.0
    %110 = vmatpush1.msra.mxu0 0.0
    %111 = vmatprep.subr.mxu0 0.0
    %112 = vmatpush1.msra.mxu0 0.0
    %113 = vmatprep.subr.mxu0 0.0
    %114 = vmatpush1.msra.mxu0 0.0
    %115 = vmatprep.subr.mxu0 0.0
    %116 = vmatpush1.msra.mxu0 0.0
    %117 = vmatprep.subr.mxu0 0.0
    %118 = vmatpush1.msra.mxu0 0.0
    %119 = vmatprep.subr.mxu0 0.0
    %120 = vmatpush1.msra.mxu0 0.0
    %121 = vmatprep.subr.mxu0 0.0
    %122 = vmatpush1.msra.mxu0 0.0
    %123 = vmatprep.subr.mxu0 0.0
    %124 = vmatpush1.msra.mxu0 0.0
    %125 = vmatprep.subr.mxu0 0.0
    %126 = vmatpush1.msra.mxu0 0.0
    %127 = vmatprep.subr.mxu0 0.0
    %128 = vmatpush1.msra.mxu0 0.0
    %129 = vmatprep.subr.mxu0 0.0
    %130 = vmatpush1.msra.mxu0 0.0
    %131 = vmatprep.subr.mxu0 0.0
    %132 = vmatpush1.msra.mxu0 0.0
    %133 = vmatprep.subr.mxu0 0.0
    %134 = vmatpush1.msra.mxu0 0.0
    %135 = vmatprep.subr.mxu0 0.0
    %136 = vmatpush1.msra.mxu0 0.0
    %137 = vmatprep.mubr.f32.mxu0 0.0
    %138 = vmatmul.mubr.f32.gmra.mrb[0].mxu0 %v49
    %v139 = vpop.f32.mrb[0].mxu0
    %v140 = vadd.f32 %v71, %v139
    %v141 = vpop.f32.mrb[0].mxu0
    %142 = vdwg.mxu0
    %v143 = vmax.f32 %v140, 0.0
    %v144 = vld [vmem:[#allocation5] sm:$0xff]
    %v145 = vld [vmem:[#allocation5 + $0x8] sm:$0xff]
    %v146 = vld [vmem:[#allocation5 + $0x10] sm:$0xff]
    %v147 = vld [vmem:[#allocation5 + $0x18] sm:$0xff]
    %v148 = vld [vmem:[#allocation5 + $0x20] sm:$0xff]
    %v149 = vld [vmem:[#allocation5 + $0x28] sm:$0xff]
    %v150 = vld [vmem:[#allocation5 + $0x30] sm:$0xff]
    %v151 = vld [vmem:[#allocation5 + $0x38] sm:$0xff]
    %v152 = vld [vmem:[#allocation5 + $0x40] sm:$0xff]
    %v153 = vld [vmem:[#allocation5 + $0x48] sm:$0xff]
    %v154 = vld [vmem:[#allocation5 + $0x50] sm:$0xff]
    %v155 = vld [vmem:[#allocation5 + $0x58] sm:$0xff]
    %v156 = vld [vmem:[#allocation5 + $0x60] sm:$0xff]
    %v157 = vld [vmem:[#allocation5 + $0x68] sm:$0xff]
    %v158 = vld [vmem:[#allocation5 + $0x70] sm:$0xff]
    %v159 = vld [vmem:[#allocation5 + $0x78] sm:$0xff]
    %v160 = vld [vmem:[%s4] sm:$0x1]
    %v162 = vlaneseq
    %v163 = vshrl.u32 %v162, 7
    %v164 = vsub.s32 0, %v163
    %v165 = vrot.slane %v160, %v164
    %167 = vmatprep.subr.mxu0 0.0
    %168 = vmatpush1.msra.mxu0 %v144
    %169 = vmatprep.subr.mxu0 0.0
    %170 = vmatpush1.msra.mxu0 %v145
    %171 = vmatprep.subr.mxu0 0.0
    %172 = vmatpush1.msra.mxu0 %v146
    %173 = vmatprep.subr.mxu0 0.0
    %174 = vmatpush1.msra.mxu0 %v147
    %175 = vmatprep.subr.mxu0 0.0
    %176 = vmatpush1.msra.mxu0 %v148
    %177 = vmatprep.subr.mxu0 0.0
    %178 = vmatpush1.msra.mxu0 %v149
    %179 = vmatprep.subr.mxu0 0.0
    %180 = vmatpush1.msra.mxu0 %v150
    %181 = vmatprep.subr.mxu0 0.0
    %182 = vmatpush1.msra.mxu0 %v151
    %183 = vmatprep.subr.mxu0 0.0
    %184 = vmatpush1.msra.mxu0 %v152
    %185 = vmatprep.subr.mxu0 0.0
    %186 = vmatpush1.msra.mxu0 %v153
    %187 = vmatprep.subr.mxu0 0.0
    %188 = vmatpush1.msra.mxu0 %v154
    %189 = vmatprep.subr.mxu0 0.0
    %190 = vmatpush1.msra.mxu0 %v155
    %191 = vmatprep.subr.mxu0 0.0
    %192 = vmatpush1.msra.mxu0 %v156
    %193 = vmatprep.subr.mxu0 0.0
    %194 = vmatpush1.msra.mxu0 %v157
    %195 = vmatprep.subr.mxu0 0.0
    %196 = vmatpush1.msra.mxu0 %v158
    %197 = vmatprep.subr.mxu0 0.0
    %198 = vmatpush1.msra.mxu0 %v159
    %199 = vmatprep.subr.mxu0 0.0
    %200 = vmatpush1.msra.mxu0 0.0
    %201 = vmatprep.subr.mxu0 0.0
    %202 = vmatpush1.msra.mxu0 0.0
    %203 = vmatprep.subr.mxu0 0.0
    %204 = vmatpush1.msra.mxu0 0.0
    %205 = vmatprep.subr.mxu0 0.0
    %206 = vmatpush1.msra.mxu0 0.0
    %207 = vmatprep.subr.mxu0 0.0
    %208 = vmatpush1.msra.mxu0 0.0
    %209 = vmatprep.subr.mxu0 0.0
    %210 = vmatpush1.msra.mxu0 0.0
    %211 = vmatprep.subr.mxu0 0.0
    %212 = vmatpush1.msra.mxu0 0.0
    %213 = vmatprep.subr.mxu0 0.0
    %214 = vmatpush1.msra.mxu0 0.0
    %215 = vmatprep.subr.mxu0 0.0
    %216 = vmatpush1.msra.mxu0 0.0
    %217 = vmatprep.subr.mxu0 0.0
    %218 = vmatpush1.msra.mxu0 0.0
    %219 = vmatprep.subr.mxu0 0.0
    %220 = vmatpush1.msra.mxu0 0.0
    %221 = vmatprep.subr.mxu0 0.0
    %222 = vmatpush1.msra.mxu0 0.0
    %223 = vmatprep.subr.mxu0 0.0
    %224 = vmatpush1.msra.mxu0 0.0
    %225 = vmatprep.subr.mxu0 0.0
    %226 = vmatpush1.msra.mxu0 0.0
    %227 = vmatprep.subr.mxu0 0.0
    %228 = vmatpush1.msra.mxu0 0.0
    %229 = vmatprep.subr.mxu0 0.0
    %230 = vmatpush1.msra.mxu0 0.0
    %231 = vmatprep.mubr.f32.mxu0 0.0
    %232 = vmatmul.mubr.f32.gmra.mrb[0].mxu0 %v143
    %v233 = vpop.f32.mrb[0].mxu0
    %v234 = vadd.f32 %v165, %v233
    %v235 = vpop.f32.mrb[0].mxu0
    %236 = vdwg.mxu0
    %v237 = vmax.f32 %v234, 0.0
    %238 = vst [vmem:[#allocation7] sm:$0xff] %v237
    // Predicated region
    $region30: #{item_module_forward.1} parent=1 // pred_check
      _
    $region31: #{item_module_forward.1} parent=1 // pred_check_branch
      %240 = sbr.rel (0) target = $region33
    $region32: #{item_module_forward.1} parent=1 // pred_region
      %s242 = ssub.s32 128, 128
      %243 = vsyncadd [#allocation4], %s242
      %s245 = sshll.u32 [#allocation7], 4
      %s246 = int_to_ptr.vmem [resolvable:$true] %s245
      %248 = dma.vmem_to_hbm [thread:$0]  %s246, 128, %s5, [#allocation4]
    $region33: #{item_module_forward.1} parent=1 // pred_fallthru
      _
    // Predicated region
    $region34: #{item_module_forward.1} parent=1 // pred_check
      _
    $region35: #{item_module_forward.1} parent=1 // pred_check_branch
      %250 = sbr.rel (0) target = $region37
    $region36: #{item_module_forward.1} parent=1 // pred_region
      %251 = dma.done [#allocation4], 128
    $region37: #{item_module_forward.1} parent=1 // pred_fallthru
      _
    %252 = vsyncpa [#allocation3], 1
    %253 = vsyncpa [#allocation6], 1
    %254 = vsyncpa [#allocation4], 1

</llo_original>
